<compile_context>
chip_gen: v6e
topology: v6e:2x2x1
jax: 0.10.0
libtpu: 0.0.40
codegen_flags: <defaults>
</compile_context>

<pallas_src>
import jax
import jax.numpy as jnp
from jax.experimental import pallas as pl
from jax.experimental.pallas import tpu as pltpu


def _gradnorm_forward_kernel(l_ref, w_ref, wl_ref, total_ref):
    # l_ref, w_ref, wl_ref: (1, num_of_task) f32 in VMEM (lane axis = task axis).
    # total_ref:            (1,) f32 in SMEM (scalar result).
    prod = l_ref[...] * w_ref[...]      # VPU: single vmul
    wl_ref[...] = prod                  # weighted per-task losses (reused by caller)
    total_ref[0] = jnp.sum(prod)        # XLU cross-lane reduce -> scalar sst to SMEM


def _gradnorm_forward_impl(L_t: jax.Array, w: jax.Array):
    """Pallas forward: returns (wL_t, total_loss)."""
    n = L_t.shape[0]
    l2 = L_t.reshape(1, n).astype(jnp.float32)
    w2 = w.reshape(1, n).astype(jnp.float32)

    wl, total = pl.pallas_call(
        _gradnorm_forward_kernel,
        out_shape=(
            jax.ShapeDtypeStruct((1, n), jnp.float32),   # wL_t
            jax.ShapeDtypeStruct((1,), jnp.float32),     # total_loss (scalar)
        ),
        # Grid-free call: whole (1, n) row vectors land in VMEM, no pipeline
        # machinery, no per-step DMA bookkeeping.
        in_specs=[
            pl.BlockSpec(memory_space=pltpu.MemorySpace.VMEM),
            pl.BlockSpec(memory_space=pltpu.MemorySpace.VMEM),
        ],
        out_specs=(
            pl.BlockSpec(memory_space=pltpu.MemorySpace.VMEM),
            pl.BlockSpec(memory_space=pltpu.MemorySpace.SMEM),
        ),
        # Advisory hint: this custom call is ~free; don't serialize around it.
        cost_estimate=pl.CostEstimate(
            flops=2 * n, transcendentals=0, bytes_accessed=12 * n + 4
        ),
    )(l2, w2)
    return wl.reshape(n), total[0]


@jax.custom_vjp
def gradnorm_forward(L_t: jax.Array, w: jax.Array):
    """Returns (wL_t, total_loss) = (L_t * w, sum(L_t * w)), differentiable."""
    return _gradnorm_forward_impl(L_t, w)


def _gradnorm_fwd(L_t, w):
    out = _gradnorm_forward_impl(L_t, w)
    return out, (L_t, w)


def _gradnorm_bwd(residuals, cotangents):
    L_t, w = residuals
    g_wl, g_total = cotangents            # (n,) and scalar
    g = g_wl + g_total                    # both outputs are functions of L_t * w
    return (g * w, g * L_t)


gradnorm_forward.defvjp(_gradnorm_fwd, _gradnorm_bwd)


class GradNormLoss:
    """JAX/Pallas port of the PyTorch GradNormLoss forward pass."""

    def __init__(self, num_of_task: int, alpha: float = 1.5):
        self.num_of_task = num_of_task
        self.alpha = alpha
        # nn.Parameter(torch.ones(num_of_task)) -> deterministic ones init.
        self.w = jnp.ones((num_of_task,), dtype=jnp.float32)
        self.L_0 = None
        # TODO(synk): additional_forward_and_backward relies on PyTorch autograd
        # graph surgery / optimizer-state mutation and is not part of the forward
        # hot path; not implemented here.

    def forward(self, L_t: jax.Array) -> jax.Array:
        if self.L_0 is None:
            self.L_0 = jax.lax.stop_gradient(L_t)
        self.L_t = L_t
        # Single kernel call produces both the weighted losses and their sum.
        self.wL_t, self.total_loss = gradnorm_forward(L_t, self.w)
        return self.total_loss

    __call__ = forward


if __name__ == "__main__":
    num_of_task = 8
    key = jax.random.PRNGKey(0)
    # Synthetic per-task losses (positive values, as losses would be).
    L_t = jax.random.uniform(
        key, (num_of_task,), dtype=jnp.float32, minval=0.1, maxval=2.0
    )

    module = GradNormLoss(num_of_task=num_of_task, alpha=1.5)
    total_loss = module(L_t)
    total_loss = jax.block_until_ready(total_loss)

    # Reference checks in plain JAX.
    ref_wl = L_t * module.w
    ref_total = jnp.sum(ref_wl)
    assert jnp.allclose(total_loss, ref_total, rtol=1e-6, atol=1e-6), (
        total_loss, ref_total)
    assert jnp.allclose(module.wL_t, ref_wl, rtol=1e-6, atol=1e-6)

    # Gradient check through the custom_vjp: d(total)/dw = L_t, d(total)/dL_t = w.
    grad_w = jax.grad(lambda w_: gradnorm_forward(L_t, w_)[1])(module.w)
    grad_w = jax.block_until_ready(grad_w)
    assert jnp.allclose(grad_w, L_t, rtol=1e-6, atol=1e-6)

    print("KERNEL_OK")
</pallas_src>

<mosaic_0001>
module attributes {stable_mosaic.version = 11 : i64} {
  func.func @_gradnorm_forward_kernel(%arg0: memref<1x8xf32, #tpu.memory_space<vmem>>, %arg1: memref<1x8xf32, #tpu.memory_space<vmem>>, %arg2: memref<1x8xf32, #tpu.memory_space<vmem>>, %arg3: memref<1xf32, #tpu.memory_space<smem>>) attributes {dimension_semantics = [], scalar_prefetch = 0 : i64, scratch_operands = 0 : i64, tpu.core_type = #tpu.core_type<tc>} {
    %c0 = arith.constant 0 : index
    %c0_0 = arith.constant 0 : index
    %0 = vector.load %arg0[%c0, %c0_0] : memref<1x8xf32, #tpu.memory_space<vmem>>, vector<1x8xf32>
    %c0_1 = arith.constant 0 : index
    %c0_2 = arith.constant 0 : index
    %1 = vector.load %arg1[%c0_1, %c0_2] : memref<1x8xf32, #tpu.memory_space<vmem>>, vector<1x8xf32>
    %2 = arith.mulf %0, %1 : vector<1x8xf32>
    %c0_3 = arith.constant 0 : index
    %c0_4 = arith.constant 0 : index
    %3 = vector.load %arg2[%c0_3, %c0_4] : memref<1x8xf32, #tpu.memory_space<vmem>>, vector<1x8xf32>
    tpu.vector_store %arg2[%c0_3, %c0_4], %2 {strides = array<i32>} : memref<1x8xf32, #tpu.memory_space<vmem>>, vector<1x8xf32>,
    %4 = vector.shape_cast %2 : vector<1x8xf32> to vector<1x1x8xf32>
    %cst = arith.constant dense<0.000000e+00> : vector<1xf32>
    %5 = vector.multi_reduction <add>, %4, %cst [1, 2] : vector<1x1x8xf32> to vector<1xf32>
    %6 = vector.shape_cast %5 : vector<1xf32> to vector<1x1x1xf32>
    %7 = vector.extract %6[0, 0, 0] : f32 from vector<1x1x1xf32>
    %c0_5 = arith.constant 0 : index
    %8 = memref.load %arg3[%c0_5] : memref<1xf32, #tpu.memory_space<smem>>
    memref.store %7, %arg3[%c0_5] : memref<1xf32, #tpu.memory_space<smem>>
    return
  }
}

</mosaic_0001>

<llo_original>
// kernel: tpu_custom_call.1
$region0: #{tpu_custom_call.1}
  #allocation0 [shape = 'u32[]', space=smem, size = 0x4, offset = 0x4, fixed_abs, tag = 'smem constant byte address 0x4 - core index']
  #allocation1 [shape = 'u32[144,128]{1,0:T(1,128)}', space=vmem, size = 0x12000, scoped, tag = 'internal scratch']
  %s0 = inlined_call_operand.hbm [shape: f32[1,8], index: 0, kind: input, shape index: {}]
  %s1 = inlined_call_operand.vmem [shape: f32[1,8], index: 1, kind: input, shape index: {}]
  %s2 = inlined_call_operand.hbm [shape: f32[1,8], index: 2, kind: output, shape index: {0}]
  %s3 = inlined_call_operand.hbm [shape: f32[1], index: 3, kind: output, shape index: {1}]
  %4 = xla_tuple %s2, %s3
  %s5 = sld [smem:[#allocation0]]
  $region30: #{tpu_custom_call.1} parent=0
    _
  %s7 = ssub.s32 1, %s5
  %s8 = scalar_select 0, %s7, %s5
  $region1: #{tpu_custom_call.1} parent=0
    #allocation2 [shape = 'u8[512]{0}', space=vmem, size = 0x400, scoped, tag = 'input window, operand 0, single buffered']
    #allocation3 [shape = 's32[1]{0}', space=sflag, size = 0x4, scoped, tag = 'scoped memory for tpu_custom_call.1']
    #allocation4 [shape = 's32[1]{0}', space=sflag, size = 0x4, scoped, tag = 'scoped memory for tpu_custom_call.1']
    #allocation5 [shape = 's32[1]{0}', space=sflag, size = 0x4, scoped, tag = 'scoped memory for tpu_custom_call.1']
    #allocation6 [shape = 'u8[512]{0}', space=vmem, size = 0x400, scoped, tag = 'output window, operand 0, single buffered']
    #allocation7 [shape = 'u8[512]{0}', space=smem, size = 0x200, scoped, tag = 'output window, operand 1, single buffered']
    %9 = vsyncpa [#allocation3], 0
    %10 = vsyncpa [#allocation4], 0
    %11 = vsyncpa [#allocation5], 0
    // Predicated region
    $region2: #{tpu_custom_call.1} parent=1 // pred_check
      _
    $region3: #{tpu_custom_call.1} parent=1 // pred_check_branch
      %13 = sbr.rel (0) target = $region5
    $region4: #{tpu_custom_call.1} parent=1 // pred_region
      %s15 = ssub.s32 16, 16
      %16 = vsyncadd [#allocation3], %s15
      %s18 = sshll.u32 [#allocation2], 4
      %s19 = int_to_ptr.vmem [resolvable:$true] %s18
      %21 = dma.hbm_to_vmem [thread:$0]  %s0, 16, %s19, [#allocation3]
    $region5: #{tpu_custom_call.1} parent=1 // pred_fallthru
      _
    // Predicated region
    $region6: #{tpu_custom_call.1} parent=1 // pred_check
      _
    $region7: #{tpu_custom_call.1} parent=1 // pred_check_branch
      %23 = sbr.rel (0) target = $region9
    $region8: #{tpu_custom_call.1} parent=1 // pred_region
      _
    $region9: #{tpu_custom_call.1} parent=1 // pred_fallthru
      _
    // Predicated region
    $region10: #{tpu_custom_call.1} parent=1 // pred_check
      _
    $region11: #{tpu_custom_call.1} parent=1 // pred_check_branch
      %25 = sbr.rel (0) target = $region13
    $region12: #{tpu_custom_call.1} parent=1 // pred_region
      %26 = dma.done [#allocation3], 16
    $region13: #{tpu_custom_call.1} parent=1 // pred_fallthru
      _
    %v27 = vld [vmem:[#allocation2] sm:$0x1]
    %v28 = vld [vmem:[%s1] sm:$0x1]
    %v29 = vmul.f32 %v27, %v28
    %vm30 = vcmask 57344
    %31 = vst.msk [vmem:[#allocation6] sm:$0x1] %vm30, %v29
    %v32 = vsel %vm30, %v29, 0.0
    %33 = vadd.xlane.f32.xlu0 %v32
    %v34 = vpop.xlane.xlu0 %33
    %v35 = vrot.slane %v34, 4
    %v36 = vadd.f32 %v34, %v35
    %v37 = vrot.slane %v36, 2
    %v38 = vadd.f32 %v36, %v37
    %v39 = vrot.slane %v38, 1
    %v40 = vadd.f32 %v38, %v39
    %s41 = vtos %v40
    %s42 = scalar_lea.smem [#allocation7], 0
    %43 = sst [smem:[%s42]] %s41
    // Predicated region
    $region14: #{tpu_custom_call.1} parent=1 // pred_check
      _
    $region15: #{tpu_custom_call.1} parent=1 // pred_check_branch
      %45 = sbr.rel (0) target = $region17
    $region16: #{tpu_custom_call.1} parent=1 // pred_region
      %s47 = ssub.s32 16, 16
      %48 = vsyncadd [#allocation4], %s47
      %s50 = sshll.u32 [#allocation6], 4
      %s51 = int_to_ptr.vmem [resolvable:$true] %s50
      %53 = dma.vmem_to_hbm [thread:$0]  %s51, 16, %s2, [#allocation4]
    $region17: #{tpu_custom_call.1} parent=1 // pred_fallthru
      _
    // Predicated region
    $region18: #{tpu_custom_call.1} parent=1 // pred_check
      _
    $region19: #{tpu_custom_call.1} parent=1 // pred_check_branch
      %55 = sbr.rel (0) target = $region21
    $region20: #{tpu_custom_call.1} parent=1 // pred_region
      %s57 = ssub.s32 16, 16
      %58 = vsyncadd [#allocation5], %s57
      %61 = dma.smem_to_hbm [#allocation7], 16, %s3, [#allocation5]
    $region21: #{tpu_custom_call.1} parent=1 // pred_fallthru
      _
    // Predicated region
    $region22: #{tpu_custom_call.1} parent=1 // pred_check
      _
    $region23: #{tpu_custom_call.1} parent=1 // pred_check_branch
      %63 = sbr.rel (0) target = $region25
    $region24: #{tpu_custom_call.1} parent=1 // pred_region
      %64 = dma.done [#allocation4], 16
    $region25: #{tpu_custom_call.1} parent=1 // pred_fallthru
      _
    // Predicated region
    $region26: #{tpu_custom_call.1} parent=1 // pred_check
      _
    $region27: #{tpu_custom_call.1} parent=1 // pred_check_branch
      %66 = sbr.rel (0) target = $region29
    $region28: #{tpu_custom_call.1} parent=1 // pred_region
      %67 = dma.done [#allocation5], 16
    $region29: #{tpu_custom_call.1} parent=1 // pred_fallthru
      _
    %68 = sfence
    %69 = vsyncpa [#allocation3], 1
    %70 = vsyncpa [#allocation4], 1
    %71 = vsyncpa [#allocation5], 1

</llo_original>
